<compile_context>
chip_gen: v7x
topology: tpu7x:2x2x1
jax: 0.10.0
libtpu: 0.0.40
codegen_flags: <defaults>
</compile_context>

<pallas_src>
import functools

import jax
import jax.numpy as jnp
import numpy as np
from jax.experimental import pallas as pl
from jax.experimental.pallas import tpu as pltpu

LANES = 128   # lane width
SUB = 8       # f32 sublane tile
TR_MAX = 512  # rows (sublanes) per grid step; sweet spot per measured roofline


def _round_up(x, d):
    return ((x + d - 1) // d) * d


def _loss_kernel(ct_ref, cp_ref, tm_ref, gt_ref, gp_ref, out_ref, acc_ref,
                 *, rows_valid, tile_rows):
    r = pl.program_id(1)

    @pl.when(r == 0)
    def _():
        acc_ref[...] = jnp.zeros_like(acc_ref)

    ct = ct_ref[0]      # (TR, 128)  y_true_cls
    cp = cp_ref[0]      # (TR, 128)  y_pred_cls
    msk = tm_ref[0]     # (TR, 128)  training_mask

    # Tail masking only when the last row-block is partial (static decision).
    need_tail_mask = (rows_valid % tile_rows) != 0
    if need_tail_mask:
        row_idx = r * tile_rows + jax.lax.broadcasted_iota(
            jnp.int32, (tile_rows, LANES), 0)
        valid = row_idx < rows_valid
        zero = jnp.zeros((tile_rows, LANES), jnp.float32)
        ct = jnp.where(valid, ct, zero)
        cp = jnp.where(valid, cp, zero)
        msk = jnp.where(valid, msk, zero)

    masked_true = ct * msk

    # --- geometry loss (AABB IoU + angle) ---
    gt = gt_ref[0]      # (5, TR, 128)  [d1,d2,d3,d4,theta]
    gp = gp_ref[0]
    d1g, d2g, d3g, d4g, thg = gt[0], gt[1], gt[2], gt[3], gt[4]
    d1p, d2p, d3p, d4p, thp = gp[0], gp[1], gp[2], gp[3], gp[4]

    area_gt = (d1g + d3g) * (d2g + d4g)
    area_pr = (d1p + d3p) * (d2p + d4p)
    w_union = jnp.minimum(d2g, d2p) + jnp.minimum(d4g, d4p)
    h_union = jnp.minimum(d1g, d1p) + jnp.minimum(d3g, d3p)
    area_intersect = w_union * h_union
    area_union = area_gt + area_pr - area_intersect

    l_aabb = -jnp.log((area_intersect + 1.0) / (area_union + 1.0))
    l_theta = 1.0 - jnp.cos(thp - thg)
    l_g = l_aabb + 20.0 * l_theta
    if need_tail_mask:
        # Garbage tail rows could inject NaN via log(); select, don't multiply.
        l_g = jnp.where(valid, l_g, 0.0)

    def part(x):  # (TR,128) -> (8,128); tile-preserving reshape, VPU-only adds
        return jnp.sum(x.reshape(tile_rows // SUB, SUB, LANES), axis=0)

    acc_ref[0] += part(masked_true * cp)   # dice intersection
    acc_ref[1] += part(masked_true)        # sum(y_true * mask)
    acc_ref[2] += part(cp * msk)           # sum(y_pred * mask)
    acc_ref[3] += part(l_g * masked_true)  # geometry loss numerator

    @pl.when(r == pl.num_programs(1) - 1)
    def _():
        out_ref[0] = acc_ref[...]


@jax.jit
def east_loss(y_true_cls, y_pred_cls, y_true_geo, y_pred_geo, training_mask):
    n, _, h, w = y_true_cls.shape
    hw = h * w
    m = n * hw                       # torch.mean denominator (N*1*H*W)

    hw_pad = _round_up(hw, LANES)    # == hw for typical EAST maps (free path)
    rows0 = hw_pad // LANES
    rows = _round_up(rows0, SUB)     # sublane-align the row axis

    def prep_cls(x):                 # (N,1,H,W) -> (N, rows, 128)
        x = x.astype(jnp.float32).reshape(n, hw)
        if hw_pad != hw:
            # TODO(synk): fallback copy; typical EAST maps have H*W % 128 == 0.
            x = jnp.pad(x, ((0, 0), (0, hw_pad - hw)))
        x = x.reshape(n, rows0, LANES)
        if rows != rows0:
            x = jnp.pad(x, ((0, 0), (0, rows - rows0), (0, 0)))
        return x

    def prep_geo(g):                 # (N,5,H,W) -> (N, 5, rows, 128), no transpose
        g = g.astype(jnp.float32).reshape(n, 5, hw)
        if hw_pad != hw:
            g = jnp.pad(g, ((0, 0), (0, 0), (0, hw_pad - hw)))
        g = g.reshape(n, 5, rows0, LANES)
        if rows != rows0:
            g = jnp.pad(g, ((0, 0), (0, 0), (0, rows - rows0), (0, 0)))
        return g

    ct = prep_cls(y_true_cls)
    cp = prep_cls(y_pred_cls)
    msk = prep_cls(training_mask)
    gt = prep_geo(y_true_geo)
    gp = prep_geo(y_pred_geo)

    tr = min(TR_MAX, rows)           # rows is a multiple of 8, so tr is too
    grid_r = pl.cdiv(rows, tr)

    kernel = functools.partial(_loss_kernel, rows_valid=rows, tile_rows=tr)

    out = pl.pallas_call(
        kernel,
        out_shape=jax.ShapeDtypeStruct((n, 4, SUB, LANES), jnp.float32),
        grid_spec=pltpu.PrefetchScalarGridSpec(
            num_scalar_prefetch=0,
            grid=(n, grid_r),
            in_specs=[
                pl.BlockSpec((1, tr, LANES), lambda i, r: (i, r, 0)),
                pl.BlockSpec((1, tr, LANES), lambda i, r: (i, r, 0)),
                pl.BlockSpec((1, tr, LANES), lambda i, r: (i, r, 0)),
                pl.BlockSpec((1, 5, tr, LANES), lambda i, r: (i, 0, r, 0)),
                pl.BlockSpec((1, 5, tr, LANES), lambda i, r: (i, 0, r, 0)),
            ],
            out_specs=pl.BlockSpec((1, 4, SUB, LANES), lambda i, r: (i, 0, 0, 0)),
            scratch_shapes=[pltpu.VMEM((4, SUB, LANES), jnp.float32)],
        ),
        compiler_params=pltpu.CompilerParams(
            dimension_semantics=("parallel", "arbitrary")),
    )(ct, cp, msk, gt, gp)

    sums = jnp.sum(out, axis=(0, 2, 3))      # (4,) cross-sample/sublane/lane finish
    intersection, sum_true, sum_pred, sum_geo = sums[0], sums[1], sums[2], sums[3]

    eps = 1e-5
    dice_loss = 1.0 - 2.0 * intersection / (sum_true + sum_pred + eps)
    classification_loss = dice_loss * 0.01
    geo_loss = sum_geo / m
    return geo_loss, classification_loss


def _reference(y_true_cls, y_pred_cls, y_true_geo, y_pred_geo, training_mask):
    eps = 1e-5
    inter = jnp.sum(y_true_cls * y_pred_cls * training_mask)
    union = jnp.sum(y_true_cls * training_mask) + jnp.sum(y_pred_cls * training_mask) + eps
    cls_loss = (1.0 - 2.0 * inter / union) * 0.01

    d1_gt, d2_gt, d3_gt, d4_gt, th_gt = jnp.split(y_true_geo, 5, axis=1)
    d1_pr, d2_pr, d3_pr, d4_pr, th_pr = jnp.split(y_pred_geo, 5, axis=1)
    area_gt = (d1_gt + d3_gt) * (d2_gt + d4_gt)
    area_pr = (d1_pr + d3_pr) * (d2_pr + d4_pr)
    w_union = jnp.minimum(d2_gt, d2_pr) + jnp.minimum(d4_gt, d4_pr)
    h_union = jnp.minimum(d1_gt, d1_pr) + jnp.minimum(d3_gt, d3_pr)
    area_intersect = w_union * h_union
    area_union = area_gt + area_pr - area_intersect
    l_aabb = -jnp.log((area_intersect + 1.0) / (area_union + 1.0))
    l_theta = 1.0 - jnp.cos(th_pr - th_gt)
    l_g = l_aabb + 20.0 * l_theta
    return jnp.mean(l_g * y_true_cls * training_mask), cls_loss


if __name__ == "__main__":
    key = jax.random.PRNGKey(0)
    k1, k2, k3, k4, k5 = jax.random.split(key, 5)

    N, H, W = 2, 16, 16
    y_true_cls = (jax.random.uniform(k1, (N, 1, H, W)) > 0.5).astype(jnp.float32)
    y_pred_cls = jax.nn.sigmoid(jax.random.normal(k2, (N, 1, H, W))).astype(jnp.float32)
    training_mask = (jax.random.uniform(k3, (N, 1, H, W)) > 0.2).astype(jnp.float32)
    y_true_geo = jnp.concatenate(
        [jax.random.uniform(k4, (N, 4, H, W), minval=0.0, maxval=10.0),
         jax.random.uniform(k4, (N, 1, H, W), minval=-0.5, maxval=0.5)], axis=1
    ).astype(jnp.float32)
    y_pred_geo = jnp.concatenate(
        [jax.random.uniform(k5, (N, 4, H, W), minval=0.0, maxval=10.0),
         jax.random.uniform(k5, (N, 1, H, W), minval=-0.5, maxval=0.5)], axis=1
    ).astype(jnp.float32)

    geo_loss, cls_loss = east_loss(y_true_cls, y_pred_cls, y_true_geo,
                                   y_pred_geo, training_mask)
    jax.block_until_ready((geo_loss, cls_loss))

    ref_geo, ref_cls = _reference(y_true_cls, y_pred_cls, y_true_geo,
                                  y_pred_geo, training_mask)
    np.testing.assert_allclose(np.array(geo_loss), np.array(ref_geo),
                               rtol=1e-4, atol=1e-4)
    np.testing.assert_allclose(np.array(cls_loss), np.array(ref_cls),
                               rtol=1e-4, atol=1e-4)
    print("KERNEL_OK")
</pallas_src>

<mosaic_0001>
module attributes {stable_mosaic.version = 11 : i64} {
  func.func @_loss_kernel(%arg0: i32, %arg1: i32, %arg2: memref<1x8x128xf32, #tpu.memory_space<vmem>>, %arg3: memref<1x8x128xf32, #tpu.memory_space<vmem>>, %arg4: memref<1x8x128xf32, #tpu.memory_space<vmem>>, %arg5: memref<1x5x8x128xf32, #tpu.memory_space<vmem>>, %arg6: memref<1x5x8x128xf32, #tpu.memory_space<vmem>>, %arg7: memref<1x4x8x128xf32, #tpu.memory_space<vmem>>, %arg8: memref<4x8x128xf32, #tpu.memory_space<vmem>>) attributes {dimension_semantics = [#tpu.dimension_semantics<parallel>, #tpu.dimension_semantics<arbitrary>], iteration_bounds = array<i64: 2, 1>, scalar_prefetch = 0 : i64, scratch_operands = 1 : i64, tpu.core_type = #tpu.core_type<tc>, window_params = [{transform_indices = @transform_0, window_bounds = array<i64: 1, 8, 128>}, {transform_indices = @transform_1, window_bounds = array<i64: 1, 8, 128>}, {transform_indices = @transform_2, window_bounds = array<i64: 1, 8, 128>}, {transform_indices = @transform_3, window_bounds = array<i64: 1, 5, 8, 128>}, {transform_indices = @transform_4, window_bounds = array<i64: 1, 5, 8, 128>}, {transform_indices = @transform_5, window_bounds = array<i64: 1, 4, 8, 128>}]} {
    %c0_i32 = arith.constant 0 : i32
    %0 = arith.cmpi eq, %arg1, %c0_i32 : i32
    %1 = arith.extui %0 : i1 to i32
    %c0_i32_0 = arith.constant 0 : i32
    %2 = arith.cmpi ne, %1, %c0_i32_0 : i32
    scf.if %2 {
      %cst_48 = arith.constant 0.000000e+00 : f32
      %102 = vector.broadcast %cst_48 : f32 to vector<4x8x128xf32>
      %c0_49 = arith.constant 0 : index
      %c0_50 = arith.constant 0 : index
      %c0_51 = arith.constant 0 : index
      %103 = vector.load %arg8[%c0_49, %c0_50, %c0_51] : memref<4x8x128xf32, #tpu.memory_space<vmem>>, vector<4x8x128xf32>
      tpu.vector_store %arg8[%c0_49, %c0_50, %c0_51], %102 {strides = array<i32>} : memref<4x8x128xf32, #tpu.memory_space<vmem>>, vector<4x8x128xf32>,
    } else {
    }
    %c0 = arith.constant 0 : index
    %c0_1 = arith.constant 0 : index
    %c0_2 = arith.constant 0 : index
    %3 = vector.load %arg2[%c0, %c0_1, %c0_2] : memref<1x8x128xf32, #tpu.memory_space<vmem>>, vector<1x8x128xf32>
    %4 = vector.shape_cast %3 : vector<1x8x128xf32> to vector<8x128xf32>
    %c0_3 = arith.constant 0 : index
    %c0_4 = arith.constant 0 : index
    %c0_5 = arith.constant 0 : index
    %5 = vector.load %arg3[%c0_3, %c0_4, %c0_5] : memref<1x8x128xf32, #tpu.memory_space<vmem>>, vector<1x8x128xf32>
    %6 = vector.shape_cast %5 : vector<1x8x128xf32> to vector<8x128xf32>
    %c0_6 = arith.constant 0 : index
    %c0_7 = arith.constant 0 : index
    %c0_8 = arith.constant 0 : index
    %7 = vector.load %arg4[%c0_6, %c0_7, %c0_8] : memref<1x8x128xf32, #tpu.memory_space<vmem>>, vector<1x8x128xf32>
    %8 = vector.shape_cast %7 : vector<1x8x128xf32> to vector<8x128xf32>
    %9 = arith.mulf %4, %8 : vector<8x128xf32>
    %c0_9 = arith.constant 0 : index
    %c0_10 = arith.constant 0 : index
    %c0_11 = arith.constant 0 : index
    %c0_12 = arith.constant 0 : index
    %10 = vector.load %arg5[%c0_9, %c0_10, %c0_11, %c0_12] : memref<1x5x8x128xf32, #tpu.memory_space<vmem>>, vector<1x5x8x128xf32>
    %11 = vector.shape_cast %10 : vector<1x5x8x128xf32> to vector<5x8x128xf32>
    %c0_13 = arith.constant 0 : index
    %c0_14 = arith.constant 0 : index
    %c0_15 = arith.constant 0 : index
    %c0_16 = arith.constant 0 : index
    %12 = vector.load %arg6[%c0_13, %c0_14, %c0_15, %c0_16] : memref<1x5x8x128xf32, #tpu.memory_space<vmem>>, vector<1x5x8x128xf32>
    %13 = vector.shape_cast %12 : vector<1x5x8x128xf32> to vector<5x8x128xf32>
    %14 = vector.extract_strided_slice %11 {offsets = [0, 0, 0], sizes = [1, 8, 128], strides = [1, 1, 1]} : vector<5x8x128xf32> to vector<1x8x128xf32>
    %15 = vector.shape_cast %14 : vector<1x8x128xf32> to vector<8x128xf32>
    %16 = vector.extract_strided_slice %11 {offsets = [1, 0, 0], sizes = [1, 8, 128], strides = [1, 1, 1]} : vector<5x8x128xf32> to vector<1x8x128xf32>
    %17 = vector.shape_cast %16 : vector<1x8x128xf32> to vector<8x128xf32>
    %18 = vector.extract_strided_slice %11 {offsets = [2, 0, 0], sizes = [1, 8, 128], strides = [1, 1, 1]} : vector<5x8x128xf32> to vector<1x8x128xf32>
    %19 = vector.shape_cast %18 : vector<1x8x128xf32> to vector<8x128xf32>
    %20 = vector.extract_strided_slice %11 {offsets = [3, 0, 0], sizes = [1, 8, 128], strides = [1, 1, 1]} : vector<5x8x128xf32> to vector<1x8x128xf32>
    %21 = vector.shape_cast %20 : vector<1x8x128xf32> to vector<8x128xf32>
    %22 = vector.extract_strided_slice %11 {offsets = [4, 0, 0], sizes = [1, 8, 128], strides = [1, 1, 1]} : vector<5x8x128xf32> to vector<1x8x128xf32>
    %23 = vector.shape_cast %22 : vector<1x8x128xf32> to vector<8x128xf32>
    %24 = vector.extract_strided_slice %13 {offsets = [0, 0, 0], sizes = [1, 8, 128], strides = [1, 1, 1]} : vector<5x8x128xf32> to vector<1x8x128xf32>
    %25 = vector.shape_cast %24 : vector<1x8x128xf32> to vector<8x128xf32>
    %26 = vector.extract_strided_slice %13 {offsets = [1, 0, 0], sizes = [1, 8, 128], strides = [1, 1, 1]} : vector<5x8x128xf32> to vector<1x8x128xf32>
    %27 = vector.shape_cast %26 : vector<1x8x128xf32> to vector<8x128xf32>
    %28 = vector.extract_strided_slice %13 {offsets = [2, 0, 0], sizes = [1, 8, 128], strides = [1, 1, 1]} : vector<5x8x128xf32> to vector<1x8x128xf32>
    %29 = vector.shape_cast %28 : vector<1x8x128xf32> to vector<8x128xf32>
    %30 = vector.extract_strided_slice %13 {offsets = [3, 0, 0], sizes = [1, 8, 128], strides = [1, 1, 1]} : vector<5x8x128xf32> to vector<1x8x128xf32>
    %31 = vector.shape_cast %30 : vector<1x8x128xf32> to vector<8x128xf32>
    %32 = vector.extract_strided_slice %13 {offsets = [4, 0, 0], sizes = [1, 8, 128], strides = [1, 1, 1]} : vector<5x8x128xf32> to vector<1x8x128xf32>
    %33 = vector.shape_cast %32 : vector<1x8x128xf32> to vector<8x128xf32>
    %34 = arith.addf %15, %19 : vector<8x128xf32>
    %35 = arith.addf %17, %21 : vector<8x128xf32>
    %36 = arith.mulf %34, %35 : vector<8x128xf32>
    %37 = arith.addf %25, %29 : vector<8x128xf32>
    %38 = arith.addf %27, %31 : vector<8x128xf32>
    %39 = arith.mulf %37, %38 : vector<8x128xf32>
    %40 = arith.minimumf %17, %27 : vector<8x128xf32>
    %41 = arith.minimumf %21, %31 : vector<8x128xf32>
    %42 = arith.addf %40, %41 : vector<8x128xf32>
    %43 = arith.minimumf %15, %25 : vector<8x128xf32>
    %44 = arith.minimumf %19, %29 : vector<8x128xf32>
    %45 = arith.addf %43, %44 : vector<8x128xf32>
    %46 = arith.mulf %42, %45 : vector<8x128xf32>
    %47 = arith.addf %36, %39 : vector<8x128xf32>
    %48 = arith.subf %47, %46 : vector<8x128xf32>
    %cst = arith.constant 1.000000e+00 : f32
    %49 = vector.broadcast %cst : f32 to vector<8x128xf32>
    %50 = arith.addf %46, %49 : vector<8x128xf32>
    %cst_17 = arith.constant 1.000000e+00 : f32
    %51 = vector.broadcast %cst_17 : f32 to vector<8x128xf32>
    %52 = arith.addf %48, %51 : vector<8x128xf32>
    %53 = arith.divf %50, %52 : vector<8x128xf32>
    %54 = math.log %53 : vector<8x128xf32>
    %cst_18 = arith.constant 0.000000e+00 : f32
    %55 = vector.broadcast %cst_18 : f32 to vector<8x128xf32>
    %56 = arith.subf %55, %54 : vector<8x128xf32>
    %57 = arith.subf %33, %23 : vector<8x128xf32>
    %58 = math.cos %57 : vector<8x128xf32>
    %cst_19 = arith.constant 1.000000e+00 : f32
    %59 = vector.broadcast %cst_19 : f32 to vector<8x128xf32>
    %60 = arith.subf %59, %58 : vector<8x128xf32>
    %cst_20 = arith.constant 2.000000e+01 : f32
    %61 = vector.broadcast %cst_20 : f32 to vector<8x128xf32>
    %62 = arith.mulf %61, %60 : vector<8x128xf32>
    %63 = arith.addf %56, %62 : vector<8x128xf32>
    %c0_21 = arith.constant 0 : index
    %c0_22 = arith.constant 0 : index
    %c0_23 = arith.constant 0 : index
    %64 = vector.load %arg8[%c0_21, %c0_22, %c0_23] : memref<4x8x128xf32, #tpu.memory_space<vmem>>, vector<1x8x128xf32>
    %65 = vector.shape_cast %64 : vector<1x8x128xf32> to vector<8x128xf32>
    %66 = arith.mulf %9, %6 : vector<8x128xf32>
    %67 = vector.shape_cast %66 : vector<8x128xf32> to vector<1x8x128xf32>
    %cst_24 = arith.constant dense<0.000000e+00> : vector<8x128xf32>
    %68 = vector.multi_reduction <add>, %67, %cst_24 [0] : vector<1x8x128xf32> to vector<8x128xf32>
    %69 = arith.addf %65, %68 : vector<8x128xf32>
    %c0_25 = arith.constant 0 : index
    %c0_26 = arith.constant 0 : index
    %c0_27 = arith.constant 0 : index
    %70 = vector.load %arg8[%c0_25, %c0_26, %c0_27] : memref<4x8x128xf32, #tpu.memory_space<vmem>>, vector<1x8x128xf32>
    %71 = vector.shape_cast %70 : vector<1x8x128xf32> to vector<8x128xf32>
    %72 = vector.shape_cast %69 : vector<8x128xf32> to vector<1x8x128xf32>
    tpu.vector_store %arg8[%c0_25, %c0_26, %c0_27], %72 {strides = array<i32>} : memref<4x8x128xf32, #tpu.memory_space<vmem>>, vector<1x8x128xf32>,
    %c1 = arith.constant 1 : index
    %c0_28 = arith.constant 0 : index
    %c0_29 = arith.constant 0 : index
    %73 = vector.load %arg8[%c1, %c0_28, %c0_29] : memref<4x8x128xf32, #tpu.memory_space<vmem>>, vector<1x8x128xf32>
    %74 = vector.shape_cast %73 : vector<1x8x128xf32> to vector<8x128xf32>
    %75 = vector.shape_cast %9 : vector<8x128xf32> to vector<1x8x128xf32>
    %cst_30 = arith.constant dense<0.000000e+00> : vector<8x128xf32>
    %76 = vector.multi_reduction <add>, %75, %cst_30 [0] : vector<1x8x128xf32> to vector<8x128xf32>
    %77 = arith.addf %74, %76 : vector<8x128xf32>
    %c1_31 = arith.constant 1 : index
    %c0_32 = arith.constant 0 : index
    %c0_33 = arith.constant 0 : index
    %78 = vector.load %arg8[%c1_31, %c0_32, %c0_33] : memref<4x8x128xf32, #tpu.memory_space<vmem>>, vector<1x8x128xf32>
    %79 = vector.shape_cast %78 : vector<1x8x128xf32> to vector<8x128xf32>
    %80 = vector.shape_cast %77 : vector<8x128xf32> to vector<1x8x128xf32>
    tpu.vector_store %arg8[%c1_31, %c0_32, %c0_33], %80 {strides = array<i32>} : memref<4x8x128xf32, #tpu.memory_space<vmem>>, vector<1x8x128xf32>,
    %c2 = arith.constant 2 : index
    %c0_34 = arith.constant 0 : index
    %c0_35 = arith.constant 0 : index
    %81 = vector.load %arg8[%c2, %c0_34, %c0_35] : memref<4x8x128xf32, #tpu.memory_space<vmem>>, vector<1x8x128xf32>
    %82 = vector.shape_cast %81 : vector<1x8x128xf32> to vector<8x128xf32>
    %83 = arith.mulf %6, %8 : vector<8x128xf32>
    %84 = vector.shape_cast %83 : vector<8x128xf32> to vector<1x8x128xf32>
    %cst_36 = arith.constant dense<0.000000e+00> : vector<8x128xf32>
    %85 = vector.multi_reduction <add>, %84, %cst_36 [0] : vector<1x8x128xf32> to vector<8x128xf32>
    %86 = arith.addf %82, %85 : vector<8x128xf32>
    %c2_37 = arith.constant 2 : index
    %c0_38 = arith.constant 0 : index
    %c0_39 = arith.constant 0 : index
    %87 = vector.load %arg8[%c2_37, %c0_38, %c0_39] : memref<4x8x128xf32, #tpu.memory_space<vmem>>, vector<1x8x128xf32>
    %88 = vector.shape_cast %87 : vector<1x8x128xf32> to vector<8x128xf32>
    %89 = vector.shape_cast %86 : vector<8x128xf32> to vector<1x8x128xf32>
    tpu.vector_store %arg8[%c2_37, %c0_38, %c0_39], %89 {strides = array<i32>} : memref<4x8x128xf32, #tpu.memory_space<vmem>>, vector<1x8x128xf32>,
    %c3 = arith.constant 3 : index
    %c0_40 = arith.constant 0 : index
    %c0_41 = arith.constant 0 : index
    %90 = vector.load %arg8[%c3, %c0_40, %c0_41] : memref<4x8x128xf32, #tpu.memory_space<vmem>>, vector<1x8x128xf32>
    %91 = vector.shape_cast %90 : vector<1x8x128xf32> to vector<8x128xf32>
    %92 = arith.mulf %63, %9 : vector<8x128xf32>
    %93 = vector.shape_cast %92 : vector<8x128xf32> to vector<1x8x128xf32>
    %cst_42 = arith.constant dense<0.000000e+00> : vector<8x128xf32>
    %94 = vector.multi_reduction <add>, %93, %cst_42 [0] : vector<1x8x128xf32> to vector<8x128xf32>
    %95 = arith.addf %91, %94 : vector<8x128xf32>
    %c3_43 = arith.constant 3 : index
    %c0_44 = arith.constant 0 : index
    %c0_45 = arith.constant 0 : index
    %96 = vector.load %arg8[%c3_43, %c0_44, %c0_45] : memref<4x8x128xf32, #tpu.memory_space<vmem>>, vector<1x8x128xf32>
    %97 = vector.shape_cast %96 : vector<1x8x128xf32> to vector<8x128xf32>
    %98 = vector.shape_cast %95 : vector<8x128xf32> to vector<1x8x128xf32>
    tpu.vector_store %arg8[%c3_43, %c0_44, %c0_45], %98 {strides = array<i32>} : memref<4x8x128xf32, #tpu.memory_space<vmem>>, vector<1x8x128xf32>,
    %c0_i32_46 = arith.constant 0 : i32
    %99 = arith.cmpi eq, %arg1, %c0_i32_46 : i32
    %100 = arith.extui %99 : i1 to i32
    %c0_i32_47 = arith.constant 0 : i32
    %101 = arith.cmpi ne, %100, %c0_i32_47 : i32
    scf.if %101 {
      %c0_48 = arith.constant 0 : index
      %c0_49 = arith.constant 0 : index
      %c0_50 = arith.constant 0 : index
      %102 = vector.load %arg8[%c0_48, %c0_49, %c0_50] : memref<4x8x128xf32, #tpu.memory_space<vmem>>, vector<4x8x128xf32>
      %c0_51 = arith.constant 0 : index
      %c0_52 = arith.constant 0 : index
      %c0_53 = arith.constant 0 : index
      %c0_54 = arith.constant 0 : index
      %103 = vector.load %arg7[%c0_51, %c0_52, %c0_53, %c0_54] : memref<1x4x8x128xf32, #tpu.memory_space<vmem>>, vector<1x4x8x128xf32>
      %104 = vector.shape_cast %103 : vector<1x4x8x128xf32> to vector<4x8x128xf32>
      %105 = vector.shape_cast %102 : vector<4x8x128xf32> to vector<1x4x8x128xf32>
      tpu.vector_store %arg7[%c0_51, %c0_52, %c0_53, %c0_54], %105 {strides = array<i32>} : memref<1x4x8x128xf32, #tpu.memory_space<vmem>>, vector<1x4x8x128xf32>,
    } else {
    }
    return
  }
  func.func @transform_0(%arg0: i32, %arg1: i32) -> (i32, i32, i32) {
    %c0_i32 = arith.constant 0 : i32
    %c0_i32_0 = arith.constant 0 : i32
    return %arg0, %arg1, %c0_i32 : i32, i32, i32
  }
  func.func @transform_1(%arg0: i32, %arg1: i32) -> (i32, i32, i32) {
    %c0_i32 = arith.constant 0 : i32
    %c0_i32_0 = arith.constant 0 : i32
    return %arg0, %arg1, %c0_i32 : i32, i32, i32
  }
  func.func @transform_2(%arg0: i32, %arg1: i32) -> (i32, i32, i32) {
    %c0_i32 = arith.constant 0 : i32
    %c0_i32_0 = arith.constant 0 : i32
    return %arg0, %arg1, %c0_i32 : i32, i32, i32
  }
  func.func @transform_3(%arg0: i32, %arg1: i32) -> (i32, i32, i32, i32) {
    %c0_i32 = arith.constant 0 : i32
    %c0_i32_0 = arith.constant 0 : i32
    %c0_i32_1 = arith.constant 0 : i32
    return %arg0, %c0_i32, %arg1, %c0_i32_0 : i32, i32, i32, i32
  }
  func.func @transform_4(%arg0: i32, %arg1: i32) -> (i32, i32, i32, i32) {
    %c0_i32 = arith.constant 0 : i32
    %c0_i32_0 = arith.constant 0 : i32
    %c0_i32_1 = arith.constant 0 : i32
    return %arg0, %c0_i32, %arg1, %c0_i32_0 : i32, i32, i32, i32
  }
  func.func @transform_5(%arg0: i32, %arg1: i32) -> (i32, i32, i32, i32) {
    %c0_i32 = arith.constant 0 : i32
    %c0_i32_0 = arith.constant 0 : i32
    %c0_i32_1 = arith.constant 0 : i32
    %c0_i32_2 = arith.constant 0 : i32
    return %arg0, %c0_i32, %c0_i32_0, %c0_i32_1 : i32, i32, i32, i32
  }
}

</mosaic_0001>

<llo_original>
// kernel: east_loss.1
$region0: #{east_loss.1}
  #allocation0 [shape = 'u32[]', space=smem, size = 0x4, offset = 0x4, fixed_abs, tag = 'smem constant byte address 0x4 - core index']
  #allocation1 [shape = 'u32[144,128]{1,0:T(1,128)}', space=vmem, size = 0x12000, scoped, tag = 'internal scratch']
  #allocation2 [shape = 'f32[4,8,128]{2,1,0:T(8,128)}', space=vmem, size = 0x4000, scoped, tag = 'scratch operand']
  %s0 = inlined_call_operand.vmem [shape: f32[2,8,128], index: 0, kind: input, shape index: {}]
  %s1 = inlined_call_operand.vmem [shape: f32[2,8,128], index: 1, kind: input, shape index: {}]
  %s2 = inlined_call_operand.vmem [shape: f32[2,8,128], index: 2, kind: input, shape index: {}]
  %s3 = inlined_call_operand.vmem [shape: f32[2,5,8,128], index: 3, kind: input, shape index: {}]
  %s4 = inlined_call_operand.vmem [shape: f32[2,5,8,128], index: 4, kind: input, shape index: {}]
  %s5 = inlined_call_operand.vmem [shape: f32[2,4,8,128], index: 5, kind: output, shape index: {}]
  %s6 = sld [smem:[#allocation0]]
  $region61: #{east_loss.1} parent=0
    _
  %s8 = ssub.s32 1, %s6
  %s9 = scalar_select 0, %s8, %s6
  loop: start=0, step=1, limit=4
  $region2: #{east_loss.1} parent=0 // loop_pre_header
    _
  $region3: #{east_loss.1} parent=0 // loop_header
    %s11 = sphi 0, %s15
    %p12 = scmp.ge.s32.totalorder %s11, 4
    %s18 = sphi 0, %s30
    %s19 = sphi 0, %s26
    %s20 = sphi 0, %s18
    %s21 = sphi 0, %s19
    %s22 = sphi 0, %s20
    %s23 = sphi 0, %s21
    %s35 = sphi 0, %s37
    %s38 = sphi 0, %s35
    %s39 = sphi 0, %s38
    %s55 = sphi 0, %s39
    %s63 = sphi 0, %s65
    %s66 = sphi 0, %s63
    %s67 = sphi 0, %s66
    %s83 = sphi 0, %s67
    %s91 = sphi 0, %s93
    %s94 = sphi 0, %s91
    %s95 = sphi 0, %s94
    %s111 = sphi 0, %s95
    %s119 = sphi 0, %s121
    %s122 = sphi 0, %s119
    %s123 = sphi 0, %s122
    %s139 = sphi 0, %s123
    %s147 = sphi 0, %s149
    %s150 = sphi 0, %s147
    %s151 = sphi 0, %s150
    %s167 = sphi 0, %s151
    %s173 = sphi 0, %s175
    %s176 = sphi 0, %s173
    %s177 = sphi 0, %s176
    %s193 = sphi 0, %s177
  $region4: #{east_loss.1} parent=0 // loop_header_branch
    %14 = sbr.rel (%p12) target = $region8
  $region5: #{east_loss.1} parent=0 // loop_body
    %s16 = ssub.s32 %s11, 1
    %s17 = ssub.s32 %s11, 2
    %s24 = sadd.s32 1, %s19
    %p25 = scmp.ge.s32.totalorder %s24, 1
    %s26 = scalar_select %p25, 0, %s24
    %s27 = sadd.s32 1, %s18
    %s28 = scalar_select %p25, %s27, %s18
    %p29 = scmp.ge.s32.totalorder %s28, 2
    %s30 = scalar_select %p29, 0, %s28
    %s31 = ssub.s32 %s18, %s30
    %s32 = ssub.s32 %s19, %s26
    %s33 = sor.u32 %s31, %s32
    %p34 = scmp.eq.s32.totalorder %s33, 0
    %s36 = sadd.s32 %s35, 1
    %s37 = scalar_select %p34, %s35, %s36
    %p40 = pneg %p34
    %p41 = scmp.eq.s32.totalorder %s11, 1
    %p42 = por %p40, %p41
    %p43 = scmp.ne.s32.totalorder %s35, %s38
    %p44 = scmp.eq.s32.totalorder %s11, 0
    %p45 = por %p43, %p44
    %p46 = scmp.ne.s32.totalorder %s35, %s38
    %p47 = scmp.eq.s32.totalorder %s16, 1
    %p48 = por %p46, %p47
    %p49 = scmp.ne.s32.totalorder %s38, %s39
    %p50 = scmp.eq.s32.totalorder %s16, 0
    %p51 = por %p49, %p50
    %p52 = scmp.ne.s32.totalorder %s38, %s39
    %p53 = scmp.eq.s32.totalorder %s17, 1
    %p54 = por %p52, %p53
    %p56 = scmp.ne.s32.totalorder %s39, %s55
    %p57 = scmp.eq.s32.totalorder %s17, 0
    %p58 = por %p56, %p57
    %s59 = ssub.s32 %s18, %s30
    %s60 = ssub.s32 %s19, %s26
    %s61 = sor.u32 %s59, %s60
    %p62 = scmp.eq.s32.totalorder %s61, 0
    %s64 = sadd.s32 %s63, 1
    %s65 = scalar_select %p62, %s63, %s64
    %p68 = pneg %p62
    %p69 = scmp.eq.s32.totalorder %s11, 1
    %p70 = por %p68, %p69
    %p71 = scmp.ne.s32.totalorder %s63, %s66
    %p72 = scmp.eq.s32.totalorder %s11, 0
    %p73 = por %p71, %p72
    %p74 = scmp.ne.s32.totalorder %s63, %s66
    %p75 = scmp.eq.s32.totalorder %s16, 1
    %p76 = por %p74, %p75
    %p77 = scmp.ne.s32.totalorder %s66, %s67
    %p78 = scmp.eq.s32.totalorder %s16, 0
    %p79 = por %p77, %p78
    %p80 = scmp.ne.s32.totalorder %s66, %s67
    %p81 = scmp.eq.s32.totalorder %s17, 1
    %p82 = por %p80, %p81
    %p84 = scmp.ne.s32.totalorder %s67, %s83
    %p85 = scmp.eq.s32.totalorder %s17, 0
    %p86 = por %p84, %p85
    %s87 = ssub.s32 %s18, %s30
    %s88 = ssub.s32 %s19, %s26
    %s89 = sor.u32 %s87, %s88
    %p90 = scmp.eq.s32.totalorder %s89, 0
    %s92 = sadd.s32 %s91, 1
    %s93 = scalar_select %p90, %s91, %s92
    %p96 = pneg %p90
    %p97 = scmp.eq.s32.totalorder %s11, 1
    %p98 = por %p96, %p97
    %p99 = scmp.ne.s32.totalorder %s91, %s94
    %p100 = scmp.eq.s32.totalorder %s11, 0
    %p101 = por %p99, %p100
    %p102 = scmp.ne.s32.totalorder %s91, %s94
    %p103 = scmp.eq.s32.totalorder %s16, 1
    %p104 = por %p102, %p103
    %p105 = scmp.ne.s32.totalorder %s94, %s95
    %p106 = scmp.eq.s32.totalorder %s16, 0
    %p107 = por %p105, %p106
    %p108 = scmp.ne.s32.totalorder %s94, %s95
    %p109 = scmp.eq.s32.totalorder %s17, 1
    %p110 = por %p108, %p109
    %p112 = scmp.ne.s32.totalorder %s95, %s111
    %p113 = scmp.eq.s32.totalorder %s17, 0
    %p114 = por %p112, %p113
    %s115 = ssub.s32 %s18, %s30
    %s116 = ssub.s32 %s19, %s26
    %s117 = sor.u32 %s115, %s116
    %p118 = scmp.eq.s32.totalorder %s117, 0
    %s120 = sadd.s32 %s119, 1
    %s121 = scalar_select %p118, %s119, %s120
    %p124 = pneg %p118
    %p125 = scmp.eq.s32.totalorder %s11, 1
    %p126 = por %p124, %p125
    %p127 = scmp.ne.s32.totalorder %s119, %s122
    %p128 = scmp.eq.s32.totalorder %s11, 0
    %p129 = por %p127, %p128
    %p130 = scmp.ne.s32.totalorder %s119, %s122
    %p131 = scmp.eq.s32.totalorder %s16, 1
    %p132 = por %p130, %p131
    %p133 = scmp.ne.s32.totalorder %s122, %s123
    %p134 = scmp.eq.s32.totalorder %s16, 0
    %p135 = por %p133, %p134
    %p136 = scmp.ne.s32.totalorder %s122, %s123
    %p137 = scmp.eq.s32.totalorder %s17, 1
    %p138 = por %p136, %p137
    %p140 = scmp.ne.s32.totalorder %s123, %s139
    %p141 = scmp.eq.s32.totalorder %s17, 0
    %p142 = por %p140, %p141
    %s143 = ssub.s32 %s18, %s30
    %s144 = ssub.s32 %s19, %s26
    %s145 = sor.u32 %s143, %s144
    %p146 = scmp.eq.s32.totalorder %s145, 0
    %s148 = sadd.s32 %s147, 1
    %s149 = scalar_select %p146, %s147, %s148
    %p152 = pneg %p146
    %p153 = scmp.eq.s32.totalorder %s11, 1
    %p154 = por %p152, %p153
    %p155 = scmp.ne.s32.totalorder %s147, %s150
    %p156 = scmp.eq.s32.totalorder %s11, 0
    %p157 = por %p155, %p156
    %p158 = scmp.ne.s32.totalorder %s147, %s150
    %p159 = scmp.eq.s32.totalorder %s16, 1
    %p160 = por %p158, %p159
    %p161 = scmp.ne.s32.totalorder %s150, %s151
    %p162 = scmp.eq.s32.totalorder %s16, 0
    %p163 = por %p161, %p162
    %p164 = scmp.ne.s32.totalorder %s150, %s151
    %p165 = scmp.eq.s32.totalorder %s17, 1
    %p166 = por %p164, %p165
    %p168 = scmp.ne.s32.totalorder %s151, %s167
    %p169 = scmp.eq.s32.totalorder %s17, 0
    %p170 = por %p168, %p169
    %s171 = ssub.s32 %s18, %s30
    %p172 = scmp.eq.s32.totalorder %s171, 0
    %s174 = sadd.s32 %s173, 1
    %s175 = scalar_select %p172, %s173, %s174
    %p178 = pneg %p172
    %p179 = scmp.eq.s32.totalorder %s11, 1
    %p180 = por %p178, %p179
    %p181 = scmp.ne.s32.totalorder %s173, %s176
    %p182 = scmp.eq.s32.totalorder %s11, 0
    %p183 = por %p181, %p182
    %p184 = scmp.ne.s32.totalorder %s173, %s176
    %p185 = scmp.eq.s32.totalorder %s16, 1
    %p186 = por %p184, %p185
    %p187 = scmp.ne.s32.totalorder %s176, %s177
    %p188 = scmp.eq.s32.totalorder %s16, 0
    %p189 = por %p187, %p188
    %p190 = scmp.ne.s32.totalorder %s176, %s177
    %p191 = scmp.eq.s32.totalorder %s17, 1
    %p192 = por %p190, %p191
    %p194 = scmp.ne.s32.totalorder %s177, %s193
    %p195 = scmp.eq.s32.totalorder %s17, 0
    %p196 = por %p194, %p195
    %p197 = scmp.le.s32.totalorder 1, %s11
    %p198 = scmp.lt.s32.totalorder %s11, 3
    %p199 = pnand %p197, %p198
    %p200 = pneg %p199
    // Predicated region
    $region9: #{east_loss.1} parent=5 // pred_check
      _
    $region10: #{east_loss.1} parent=5 // pred_check_branch
      %202 = sbr.rel (%p199) target = $region12
    $region11: #{east_loss.1} parent=5 // pred_region
      %s203 = ssub.s32 %s11, 1
    $region12: #{east_loss.1} parent=5 // pred_fallthru
      _
    %p204 = scmp.lt.s32.totalorder %s11, 2
    // Predicated region
    $region13: #{east_loss.1} parent=5 // pred_check
      %p205 = pneg %p204
    $region14: #{east_loss.1} parent=5 // pred_check_branch
      %207 = sbr.rel (%p205) target = $region16
    $region15: #{east_loss.1} parent=5 // pred_region
      // Predicated region
      $region17: #{east_loss.1} parent=15 // pred_check
        %p208 = pneg %p45
      $region18: #{east_loss.1} parent=15 // pred_check_branch
        %210 = sbr.rel (%p208) target = $region20
      $region19: #{east_loss.1} parent=15 // pred_region
        %p211 = scmp.lt.s32.totalorder %s18, 1
        %s212 = scalar_select %p211, %s18, 1
        %p213 = scmp.lt.s32.totalorder %s19, 0
        %s214 = scalar_select %p213, %s19, 0
        %s215 = sadd.s32 %s214, %s212
        %s216 = smul.addr %s215, 8
        %s217 = scalar_lea.vmem %s0, %s216
      $region20: #{east_loss.1} parent=15 // pred_fallthru
        _
      // Predicated region
      $region21: #{east_loss.1} parent=15 // pred_check
        %p218 = pneg %p73
      $region22: #{east_loss.1} parent=15 // pred_check_branch
        %220 = sbr.rel (%p218) target = $region24
      $region23: #{east_loss.1} parent=15 // pred_region
        %p221 = scmp.lt.s32.totalorder %s18, 1
        %s222 = scalar_select %p221, %s18, 1
        %p223 = scmp.lt.s32.totalorder %s19, 0
        %s224 = scalar_select %p223, %s19, 0
        %s225 = sadd.s32 %s224, %s222
        %s226 = smul.addr %s225, 8
        %s227 = scalar_lea.vmem %s1, %s226
      $region24: #{east_loss.1} parent=15 // pred_fallthru
        _
      // Predicated region
      $region25: #{east_loss.1} parent=15 // pred_check
        %p228 = pneg %p101
      $region26: #{east_loss.1} parent=15 // pred_check_branch
        %230 = sbr.rel (%p228) target = $region28
      $region27: #{east_loss.1} parent=15 // pred_region
        %p231 = scmp.lt.s32.totalorder %s18, 1
        %s232 = scalar_select %p231, %s18, 1
        %p233 = scmp.lt.s32.totalorder %s19, 0
        %s234 = scalar_select %p233, %s19, 0
        %s235 = sadd.s32 %s234, %s232
        %s236 = smul.addr %s235, 8
        %s237 = scalar_lea.vmem %s2, %s236
      $region28: #{east_loss.1} parent=15 // pred_fallthru
        _
      // Predicated region
      $region29: #{east_loss.1} parent=15 // pred_check
        %p238 = pneg %p129
      $region30: #{east_loss.1} parent=15 // pred_check_branch
        %240 = sbr.rel (%p238) target = $region32
      $region31: #{east_loss.1} parent=15 // pred_region
        %p241 = scmp.lt.s32.totalorder %s18, 1
        %s242 = scalar_select %p241, %s18, 1
        %p243 = scmp.lt.s32.totalorder %s19, 0
        %s244 = scalar_select %p243, %s19, 0
        %s245 = smul.addr %s242, 5
        %s246 = sadd.s32 %s244, %s245
        %s247 = smul.addr %s246, 8
        %s248 = scalar_lea.vmem %s3, %s247
      $region32: #{east_loss.1} parent=15 // pred_fallthru
        _
      // Predicated region
      $region33: #{east_loss.1} parent=15 // pred_check
        %p249 = pneg %p157
      $region34: #{east_loss.1} parent=15 // pred_check_branch
        %251 = sbr.rel (%p249) target = $region36
      $region35: #{east_loss.1} parent=15 // pred_region
        %p252 = scmp.lt.s32.totalorder %s18, 1
        %s253 = scalar_select %p252, %s18, 1
        %p254 = scmp.lt.s32.totalorder %s19, 0
        %s255 = scalar_select %p254, %s19, 0
        %s256 = smul.addr %s253, 5
        %s257 = sadd.s32 %s255, %s256
        %s258 = smul.addr %s257, 8
        %s259 = scalar_lea.vmem %s4, %s258
      $region36: #{east_loss.1} parent=15 // pred_fallthru
        _
    $region16: #{east_loss.1} parent=5 // pred_fallthru
      _
    %p260 = scmp.le.s32.totalorder 1, %s11
    %p261 = scmp.lt.s32.totalorder %s11, 3
    %p262 = pnand %p260, %p261
    %p263 = pneg %p262
    // Predicated region
    $region37: #{east_loss.1} parent=5 // pred_check
      _
    $region38: #{east_loss.1} parent=5 // pred_check_branch
      %265 = sbr.rel (%p262) target = $region40
    $region39: #{east_loss.1} parent=5 // pred_region
      %s266 = ssub.s32 %s11, 1
      %p267 = scmp.lt.s32.totalorder %s20, 1
      %s268 = scalar_select %p267, %s20, 1
      %p269 = scmp.lt.s32.totalorder %s21, 0
      %s270 = scalar_select %p269, %s21, 0
      %s271 = sadd.s32 %s270, %s268
      %s272 = smul.addr %s271, 8
      %s273 = scalar_lea.vmem %s0, %s272
      %p274 = pneg %p51
      %p275 = pneg %p48
      %p276 = scmp.lt.s32.totalorder %s20, 1
      %s277 = scalar_select %p276, %s20, 1
      %p278 = scmp.lt.s32.totalorder %s21, 0
      %s279 = scalar_select %p278, %s21, 0
      %s280 = sadd.s32 %s279, %s277
      %s281 = smul.addr %s280, 8
      %s282 = scalar_lea.vmem %s1, %s281
      %p283 = pneg %p79
      %p284 = pneg %p76
      %p285 = scmp.lt.s32.totalorder %s20, 1
      %s286 = scalar_select %p285, %s20, 1
      %p287 = scmp.lt.s32.totalorder %s21, 0
      %s288 = scalar_select %p287, %s21, 0
      %s289 = sadd.s32 %s288, %s286
      %s290 = smul.addr %s289, 8
      %s291 = scalar_lea.vmem %s2, %s290
      %p292 = pneg %p107
      %p293 = pneg %p104
      %p294 = scmp.lt.s32.totalorder %s20, 1
      %s295 = scalar_select %p294, %s20, 1
      %p296 = scmp.lt.s32.totalorder %s21, 0
      %s297 = scalar_select %p296, %s21, 0
      %s298 = smul.addr %s295, 5
      %s299 = sadd.s32 %s297, %s298
      %s300 = smul.addr %s299, 8
      %s301 = scalar_lea.vmem %s3, %s300
      %p302 = pneg %p135
      %p303 = pneg %p132
      %p304 = scmp.lt.s32.totalorder %s20, 1
      %s305 = scalar_select %p304, %s20, 1
      %p306 = scmp.lt.s32.totalorder %s21, 0
      %s307 = scalar_select %p306, %s21, 0
      %s308 = smul.addr %s305, 5
      %s309 = sadd.s32 %s307, %s308
      %s310 = smul.addr %s309, 8
      %s311 = scalar_lea.vmem %s4, %s310
      %p312 = pneg %p163
      %p313 = pneg %p160
      %p314 = pneg %p189
      %p315 = pneg %p186
      %p316 = scmp.lt.s32.totalorder %s20, 1
      %s317 = scalar_select %p316, %s20, 1
      %s318 = smul.addr %s317, 4
      %s319 = smul.addr %s318, 8
      %s320 = scalar_lea.vmem %s5, %s319
      %p321 = scmp.lt.s32.totalorder %s20, 1
      %s322 = scalar_select %p321, %s20, 1
      %p323 = scmp.lt.s32.totalorder %s21, 0
      %s324 = scalar_select %p323, %s21, 0
      %s325 = sadd.s32 %s324, %s322
      %s326 = smul.addr %s325, 8
      %s327 = scalar_lea.vmem %s0, %s326
      %p328 = scmp.lt.s32.totalorder %s20, 1
      %s329 = scalar_select %p328, %s20, 1
      %p330 = scmp.lt.s32.totalorder %s21, 0
      %s331 = scalar_select %p330, %s21, 0
      %s332 = sadd.s32 %s331, %s329
      %s333 = smul.addr %s332, 8
      %s334 = scalar_lea.vmem %s1, %s333
      %p335 = scmp.lt.s32.totalorder %s20, 1
      %s336 = scalar_select %p335, %s20, 1
      %p337 = scmp.lt.s32.totalorder %s21, 0
      %s338 = scalar_select %p337, %s21, 0
      %s339 = sadd.s32 %s338, %s336
      %s340 = smul.addr %s339, 8
      %s341 = scalar_lea.vmem %s2, %s340
      %p342 = scmp.lt.s32.totalorder %s20, 1
      %s343 = scalar_select %p342, %s20, 1
      %p344 = scmp.lt.s32.totalorder %s21, 0
      %s345 = scalar_select %p344, %s21, 0
      %s346 = smul.addr %s343, 5
      %s347 = sadd.s32 %s345, %s346
      %s348 = smul.addr %s347, 8
      %s349 = scalar_lea.vmem %s3, %s348
      %p350 = scmp.lt.s32.totalorder %s20, 1
      %s351 = scalar_select %p350, %s20, 1
      %p352 = scmp.lt.s32.totalorder %s21, 0
      %s353 = scalar_select %p352, %s21, 0
      %s354 = smul.addr %s351, 5
      %s355 = sadd.s32 %s353, %s354
      %s356 = smul.addr %s355, 8
      %s357 = scalar_lea.vmem %s4, %s356
      %p358 = scmp.lt.s32.totalorder %s20, 1
      %s359 = scalar_select %p358, %s20, 1
      %s360 = smul.addr %s359, 4
      %s361 = smul.addr %s360, 8
      %s362 = scalar_lea.vmem %s5, %s361
      %p363 = scmp.eq.s32.totalorder %s21, 0
      // Predicated region
      $region41: #{east_loss.1} parent=39 // pred_check
        %p364 = pneg %p363
      $region42: #{east_loss.1} parent=39 // pred_check_branch
        %366 = sbr.rel (%p364) target = $region44
      $region43: #{east_loss.1} parent=39 // pred_region
        %367 = vst [vmem:[#allocation2] sm:$0xff] 0.0
        %368 = vst [vmem:[#allocation2 + $0x8] sm:$0xff] 0.0
        %369 = vst [vmem:[#allocation2 + $0x10] sm:$0xff] 0.0
        %370 = vst [vmem:[#allocation2 + $0x18] sm:$0xff] 0.0
      $region44: #{east_loss.1} parent=39 // pred_fallthru
        _
      %v371 = vld [vmem:[%s327] sm:$0xff]
      %v372 = vld [vmem:[%s334] sm:$0xff]
      %v373 = vld [vmem:[%s341] sm:$0xff]
      %v374 = vmul.f32 %v371, %v373
      %v375 = vld [vmem:[%s349] sm:$0xff]
      %v376 = vld [vmem:[%s349 + $0x8] sm:$0xff]
      %v377 = vld [vmem:[%s349 + $0x10] sm:$0xff]
      %v378 = vld [vmem:[%s349 + $0x18] sm:$0xff]
      %v379 = vld [vmem:[%s349 + $0x20] sm:$0xff]
      %v380 = vld [vmem:[%s357] sm:$0xff]
      %v381 = vld [vmem:[%s357 + $0x8] sm:$0xff]
      %v382 = vld [vmem:[%s357 + $0x10] sm:$0xff]
      %v383 = vld [vmem:[%s357 + $0x18] sm:$0xff]
      %v384 = vld [vmem:[%s357 + $0x20] sm:$0xff]
      %v385 = vadd.f32 %v375, %v377
      %v386 = vadd.f32 %v376, %v378
      %v387 = vmul.f32 %v385, %v386
      %v388 = vadd.f32 %v380, %v382
      %v389 = vadd.f32 %v381, %v383
      %v390 = vmul.f32 %v388, %v389
      %v391 = vmin.f32 %v376, %v381
      %v392 = vmin.f32 %v378, %v383
      %v393 = vadd.f32 %v391, %v392
      %v394 = vmin.f32 %v375, %v380
      %v395 = vmin.f32 %v377, %v382
      %v396 = vadd.f32 %v394, %v395
      %v397 = vmul.f32 %v393, %v396
      %v398 = vadd.f32 %v387, %v390
      %v399 = vsub.f32 %v398, %v397
      %v400 = vadd.f32 %v397, 1.0
      %v401 = vadd.f32 %v399, 1.0
      %v402 = vrcp.pop %v401
      %v403 = vmul.f32 %v400, %v402
      %v404 = vlog2.pop %v403
      %v405 = vmul.f32 %v404, 0.6931472
      %v406 = vsub.f32 0.0, %v405
      %v407 = vsub.f32 %v384, %v379
      %v408 = vand.u32 2147483647, %v407
      %vm409 = vcmp.le.f32.partialorder %v408, 0.7853982
      %vm410 = vcmp.lt.s32.totalorder %v407, 0
      %v411 = vand.u32 %v407, 2139095040
      %v412 = vshrl.u32 %v411, 23
      %v413 = vsub.s32 %v412, 127
      %v414 = vand.u32 2147483647, %v407
      %v415 = vand.u32 %v414, 8388607
      %v416 = vor.u32 %v415, 8388608
      %v417 = vsub.s32 0, %v416
      %v418 = vadd.s32 %v413, 1
      %vm419 = vcmp.gt.s32.totalorder %v418, 0
      %v420 = vsel %vm419, %v418, 0
      %v421 = vshrl.u32 %v420, 5
      %v422 = vand.u32 %v420, 31
      %v423 = vsub.s32 32, %v422
      %v424 = vshrl.u32 683565275, %v423
      %v425 = vshll.u32 683565275, %v422
      %v426 = vshrl.u32 2475754826, %v423
      %v427 = vor.u32 %v425, %v426
      %v428 = vshll.u32 2475754826, %v422
      %v429 = vshrl.u32 2131351028, %v423
      %v430 = vor.u32 %v428, %v429
      %v431 = vshll.u32 2131351028, %v422
      %v432 = vshrl.u32 2102212464, %v423
      %v433 = vor.u32 %v431, %v432
      %v434 = vshll.u32 2102212464, %v422
      %v435 = vshrl.u32 920167782, %v423
      %v436 = vor.u32 %v434, %v435
      %v437 = vshll.u32 920167782, %v422
      %v438 = vshrl.u32 1326507024, %v423
      %v439 = vor.u32 %v437, %v438
      %vm440 = vcmp.lt.s32.totalorder %v421, 1
      %vm441 = vcmp.lt.s32.totalorder %v421, 2
      %vm442 = vcmp.lt.s32.totalorder %v421, 3
      %vm443 = vcmp.lt.s32.totalorder %v421, 4
      %v444 = vsel %vm440, %v424, %v427
      %v445 = vsel %vm443, %v433, 2102212464
      %v446 = vsel %vm442, %v430, %v445
      %v447 = vsel %vm441, %v444, %v446
      %v448 = vsel %vm440, %v427, %v430
      %v449 = vsel %vm443, %v436, 920167782
      %v450 = vsel %vm442, %v433, %v449
      %v451 = vsel %vm441, %v448, %v450
      %v452 = vsel %vm440, %v430, %v433
      %v453 = vsel %vm443, %v439, 1326507024
      %v454 = vsel %vm442, %v436, %v453
      %v455 = vsel %vm441, %v452, %v454
      %v456 = vshll.u32 %v416, 8
      %v457 = vmul.u32.u64.compose %v456, %v455
      %v458 = vextract.low.u32 %v457
      %v459 = vextract.high.u32 %v457
      %v460 = vmul.u32.u64.compose %v456, %v451
      %v461 = vextract.low.u32 %v460
      %v462 = vextract.high.u32 %v460
      %v463 = vmul.u32 %v456, %v447
      %v464 = vadd.s32 %v459, %v461
      %vm465 = vc.u32 %v459, %v461
      %v466 = vadd.s32 %v462, 1
      %v467 = vsel %vm465, %v466, %v462
      %v468 = vadd.s32 %v463, %v467
      %v469 = vadd.s32 %v468, 536870912
      %v470 = vshrl.u32 %v469, 30
      %v471 = vshll.u32 %v470, 30
      %v472 = vsub.s32 %v468, %v471
      %vm473 = vcmp.lt.s32.totalorder %v472, 0
      %v474 = vsub.s32 0, %v472
      %v475 = vsel %vm473, %v474, %v472
      %v476 = vclz %v475
      %v477 = vsub.s32 %v476, 2
      %vm478 = vcmp.gt.s32.totalorder 0, %v477
      %v479 = vsel %vm478, 0, %v477
      %v480 = vsub.s32 32, %v479
      %v481 = vshll.u32 %v472, %v479
      %v482 = vshrl.u32 %v464, %v480
      %v483 = vor.u32 %v481, %v482
      %v484 = vsub.s32 4294967266, %v479
      %v485 = vadd.s32 %v484, 127
      %v486 = vshll.u32 %v485, 23
      %v487 = vor.u32 4788187, %v486
      %v488 = vand.u32 2147483647, %v487
      %v490 = vcvt.s32.f32 %v483
      %v491 = vmul.f32 %v490, %v488
      %v492 = vxor.u32 %v491, 2147483648
      %v493 = vsel %vm410, %v492, %v491
      %v494 = vsub.s32 4, %v470
      %v495 = vsel %vm410, %v494, %v470
      %v496 = vsel %vm409, %v407, %v493
      %v497 = vsel %vm409, 0, %v495
      %v498 = vcosq.f32.pop %v496
      %v499 = vsinq.f32.pop %v496
      %vm500 = vweird.f32 %v407
      %v501 = vand.u32 %v497, 3
      %vm502 = vcmp.lt.s32.totalorder %v501, 2
      %vm503 = vcmp.eq.s32.totalorder %v501, 0
      %v504 = vxor.u32 %v499, 2147483648
      %v505 = vsel %vm503, %v498, %v504
      %vm506 = vcmp.eq.s32.totalorder %v501, 2
      %v507 = vxor.u32 %v498, 2147483648
      %v508 = vsel %vm506, %v507, %v499
      %v509 = vsel %vm502, %v505, %v508
      %v510 = vsel %vm500, nan, %v509
      %v511 = vsub.f32 1.0, %v510
      %v512 = vmul.f32 %v511, 20.0
      %v513 = vadd.f32 %v406, %v512
      %v514 = vld [vmem:[#allocation2] sm:$0xff]
      %v515 = vmul.f32 %v374, %v372
      %v516 = vadd.f32 %v515, 0.0
      %v517 = vadd.f32 %v514, %v516
      %518 = vst [vmem:[#allocation2] sm:$0xff] %v517
      %s519 = scalar_lea.vmem [#allocation2], 8
      %v520 = vld [vmem:[%s519] sm:$0xff]
      %v521 = vadd.f32 %v374, 0.0
      %v522 = vadd.f32 %v520, %v521
      %523 = vst [vmem:[%s519] sm:$0xff] %v522
      %s524 = scalar_lea.vmem [#allocation2], 16
      %v525 = vld [vmem:[%s524] sm:$0xff]
      %v526 = vmul.f32 %v372, %v373
      %v527 = vadd.f32 %v526, 0.0
      %v528 = vadd.f32 %v525, %v527
      %529 = vst [vmem:[%s524] sm:$0xff] %v528
      %s530 = scalar_lea.vmem [#allocation2], 24
      %v531 = vld [vmem:[%s530] sm:$0xff]
      %v532 = vmul.f32 %v513, %v374
      %v533 = vadd.f32 %v532, 0.0
      %v534 = vadd.f32 %v531, %v533
      %535 = vst [vmem:[%s530] sm:$0xff] %v534
      // Predicated region
      $region45: #{east_loss.1} parent=39 // pred_check
        %p536 = pneg %p363
      $region46: #{east_loss.1} parent=39 // pred_check_branch
        %538 = sbr.rel (%p536) target = $region48
      $region47: #{east_loss.1} parent=39 // pred_region
        %v539 = vld [vmem:[#allocation2] sm:$0xff]
        %v540 = vld [vmem:[#allocation2 + $0x8] sm:$0xff]
        %v541 = vld [vmem:[#allocation2 + $0x10] sm:$0xff]
        %v542 = vld [vmem:[#allocation2 + $0x18] sm:$0xff]
        %543 = vst [vmem:[%s362] sm:$0xff] %v539
        %544 = vst [vmem:[%s362 + $0x8] sm:$0xff] %v540
        %545 = vst [vmem:[%s362 + $0x10] sm:$0xff] %v541
        %546 = vst [vmem:[%s362 + $0x18] sm:$0xff] %v542
      $region48: #{east_loss.1} parent=39 // pred_fallthru
        _
      %p547 = scmp.lt.s32.totalorder %s20, 1
      %s548 = scalar_select %p547, %s20, 1
      %s549 = smul.addr %s548, 4
      %s550 = smul.addr %s549, 8
      %s551 = scalar_lea.vmem %s5, %s550
      // Predicated region
      $region49: #{east_loss.1} parent=39 // pred_check
        %p552 = pneg %p186
      $region50: #{east_loss.1} parent=39 // pred_check_branch
        %554 = sbr.rel (%p552) target = $region52
      $region51: #{east_loss.1} parent=39 // pred_region
        _
      $region52: #{east_loss.1} parent=39 // pred_fallthru
        _
    $region40: #{east_loss.1} parent=5 // pred_fallthru
      _
    %p555 = scmp.le.s32.totalorder 2, %s11
    // Predicated region
    $region53: #{east_loss.1} parent=5 // pred_check
      %p556 = pneg %p555
    $region54: #{east_loss.1} parent=5 // pred_check_branch
      %558 = sbr.rel (%p556) target = $region56
    $region55: #{east_loss.1} parent=5 // pred_region
      %s559 = ssub.s32 %s11, 2
      // Predicated region
      $region57: #{east_loss.1} parent=55 // pred_check
        %p560 = pneg %p192
      $region58: #{east_loss.1} parent=55 // pred_check_branch
        %562 = sbr.rel (%p560) target = $region60
      $region59: #{east_loss.1} parent=55 // pred_region
        %p563 = scmp.lt.s32.totalorder %s22, 1
        %s564 = scalar_select %p563, %s22, 1
        %s565 = smul.addr %s564, 4
        %s566 = smul.addr %s565, 8
        %s567 = scalar_lea.vmem %s5, %s566
      $region60: #{east_loss.1} parent=55 // pred_fallthru
        _
    $region56: #{east_loss.1} parent=5 // pred_fallthru
      _
  $region6: #{east_loss.1} parent=0 // loop_footer
    %s15 = sadd.s32 1, %s11
  $region7: #{east_loss.1} parent=0 // loop_footer_branch
    %10 = sbr.rel target = $region3
  $region8: #{east_loss.1} parent=0 // loop_exit
    _

</llo_original>
